<compile_context>
chip_gen: v7x
topology: tpu7x:2x2x1
jax: 0.10.0
libtpu: 0.0.40
codegen_flags: <defaults>
</compile_context>

<pallas_src>
import jax
import jax.numpy as jnp
from jax.experimental import pallas as pl
from jax.experimental.pallas import tpu as pltpu


def _base_model_kernel(un_ref, in_ref, outf_ref, w1_ref, b1_ref, w2_ref, b2_ref,
                       o_ref):
    """Fused base_model: combine the three direction streams + 2-layer MLP."""
    # combine message streams; accumulate the add in f32 (v5e VPU has no bf16)
    x = (un_ref[...].astype(jnp.float32)
         + in_ref[...].astype(jnp.float32)
         + outf_ref[...].astype(jnp.float32))                   # (tm, Fp) f32
    # hidden layer on the MXU: bf16 operands, f32 accumulation
    h = jnp.dot(x.astype(jnp.bfloat16), w1_ref[...],
                preferred_element_type=jnp.float32)             # (tm, Hp) f32
    h = jnp.maximum(h + b1_ref[...], 0.0)                       # bias+ReLU f32
    # output projection on the MXU
    o = jnp.dot(h.astype(jnp.bfloat16), w2_ref[...],
                preferred_element_type=jnp.float32)             # (tm, Cp) f32
    o_ref[...] = (o + b2_ref[...]).astype(o_ref.dtype)          # bf16 store


def _pad_axis(x, mult, axis):
    size = x.shape[axis]
    pad = (-size) % mult
    if pad == 0:
        return x
    widths = [(0, 0)] * x.ndim
    widths[axis] = (0, pad)
    return jnp.pad(x, widths)


def _round_up(x, m):
    return ((x + m - 1) // m) * m


def two_dir_base_sg_forward(un_feat, in_feat, out_feat, params,
                            idx=None, query_edges=None, *, tile_m=None):
    """JAX wrapper mirroring TwoDirBaseSGModel.forward semantics.

    un_feat/in_feat/out_feat : [N, F] pre-propagated node features
    idx                      : int32 indices into the output rows
    query_edges              : if not None, the full output is returned
    tile_m                   : optional row tile override (multiple of 8)
    """
    w1 = params["w1"].astype(jnp.bfloat16)
    b1 = params["b1"].astype(jnp.float32).reshape(1, -1)
    w2 = params["w2"].astype(jnp.bfloat16)
    b2 = params["b2"].astype(jnp.float32).reshape(1, -1)
    C = params["w2"].shape[1]

    # bf16 streams: halves the dominant HBM read traffic (kernel is mem-bound).
    un_feat = un_feat.astype(jnp.bfloat16)
    in_feat = in_feat.astype(jnp.bfloat16)
    out_feat = out_feat.astype(jnp.bfloat16)

    # Fused `output[idx]` semantics: the scorer is row-wise, so gathering the
    # (bf16) feature streams first is exact and the kernel computes only
    # len(idx) rows instead of all N.
    if query_edges is None and idx is not None:
        un_feat = jnp.take(un_feat, idx, axis=0)
        in_feat = jnp.take(in_feat, idx, axis=0)
        out_feat = jnp.take(out_feat, idx, axis=0)
    M = un_feat.shape[0]

    # Lane-pad feature / hidden / class axes to multiples of 128 only (zero
    # padding is numerically neutral); rows are NOT padded.
    un_p = _pad_axis(un_feat, 128, 1)
    in_p = _pad_axis(in_feat, 128, 1)
    ot_p = _pad_axis(out_feat, 128, 1)
    w1_p = _pad_axis(_pad_axis(w1, 128, 0), 128, 1)
    b1_p = _pad_axis(b1, 128, 1)
    w2_p = _pad_axis(_pad_axis(w2, 128, 0), 128, 1)
    b2_p = _pad_axis(b2, 128, 1)

    Fp = un_p.shape[1]
    Hp = w1_p.shape[1]
    Cp = w2_p.shape[1]

    if tile_m is None:
        # Big tiles (~85% of the HBM roofline per measured tiling data) while
        # keeping >=2 grid steps so the "parallel" axis shards across v7x's
        # two TensorCores.
        tile_m = max(8, min(512, _round_up(pl.cdiv(M, 2), 8)))
    grid = (pl.cdiv(M, tile_m),)

    # VMEM budget: double-buffered feature/output tiles + weights + margin,
    # capped at ~80% of physical VMEM (v7x: ~51 MiB of 64; v5e/v6e: ~102 of 128).
    tile_bytes = 3 * tile_m * Fp * 2 + tile_m * Cp * 2
    weight_bytes = (Fp * Hp + Hp * Cp) * 2 + (Hp + Cp) * 4
    vmem_needed = 2 * tile_bytes + 2 * weight_bytes + (2 << 20)
    try:
        vmem_cap = int(pltpu.get_tpu_info().vmem_capacity_bytes)
    except Exception:
        vmem_cap = 64 << 20
    vmem_limit = int(min(max(vmem_needed, 16 << 20), int(0.8 * vmem_cap)))

    out = pl.pallas_call(
        _base_model_kernel,
        out_shape=jax.ShapeDtypeStruct((M, Cp), jnp.bfloat16),
        grid_spec=pltpu.PrefetchScalarGridSpec(
            num_scalar_prefetch=0,
            grid=grid,
            in_specs=[
                pl.BlockSpec((tile_m, Fp), lambda i: (i, 0)),   # un features
                pl.BlockSpec((tile_m, Fp), lambda i: (i, 0)),   # in features
                pl.BlockSpec((tile_m, Fp), lambda i: (i, 0)),   # out features
                pl.BlockSpec((Fp, Hp), lambda i: (0, 0)),       # W1 (resident)
                pl.BlockSpec((1, Hp), lambda i: (0, 0)),        # b1
                pl.BlockSpec((Hp, Cp), lambda i: (0, 0)),       # W2 (resident)
                pl.BlockSpec((1, Cp), lambda i: (0, 0)),        # b2
            ],
            out_specs=pl.BlockSpec((tile_m, Cp), lambda i: (i, 0)),
        ),
        compiler_params=pltpu.CompilerParams(
            dimension_semantics=("parallel",),
            vmem_limit_bytes=vmem_limit,
        ),
    )(un_p, in_p, ot_p, w1_p, b1_p, w2_p, b2_p)

    # strip class padding; mirror `output[idx] if query_edges is None else
    # output` (the idx gather was already fused above); report in f32.
    return out[:, :C].astype(jnp.float32)


def init_params(key, feat_dim, hidden_dim, num_classes):
    k1, k2, k3, k4 = jax.random.split(key, 4)
    scale1 = 1.0 / jnp.sqrt(feat_dim)
    scale2 = 1.0 / jnp.sqrt(hidden_dim)
    return {
        "w1": jax.random.normal(k1, (feat_dim, hidden_dim), jnp.float32) * scale1,
        "b1": jax.random.normal(k2, (1, hidden_dim), jnp.float32) * 0.01,
        "w2": jax.random.normal(k3, (hidden_dim, num_classes), jnp.float32) * scale2,
        "b2": jax.random.normal(k4, (1, num_classes), jnp.float32) * 0.01,
    }


if __name__ == "__main__":
    key = jax.random.PRNGKey(0)
    k_un, k_in, k_out, k_par, k_idx = jax.random.split(key, 5)

    N, F, H, C = 512, 128, 128, 4            # small synthetic shapes
    NUM_IDX = 256
    un_feat = jax.random.normal(k_un, (N, F), jnp.float32)
    in_feat = jax.random.normal(k_in, (N, F), jnp.float32)
    out_feat = jax.random.normal(k_out, (N, F), jnp.float32)
    params = init_params(k_par, F, H, C)
    idx = jax.random.randint(k_idx, (NUM_IDX,), 0, N)

    # node-classification style call: return output[idx]
    out = two_dir_base_sg_forward(un_feat, in_feat, out_feat, params, idx=idx)
    out = jax.block_until_ready(out)

    # link-prediction style call: query_edges set -> full output returned
    out_full = two_dir_base_sg_forward(un_feat, in_feat, out_feat, params,
                                       idx=None, query_edges=object())
    out_full = jax.block_until_ready(out_full)

    # reference in plain JAX mirroring the kernel's numeric recipe
    # (bf16 streams, f32 combine, bf16 MXU operands / f32 accumulate, bf16 out)
    def ref_forward(un, inn, ot):
        unb = un.astype(jnp.bfloat16).astype(jnp.float32)
        inb = inn.astype(jnp.bfloat16).astype(jnp.float32)
        otb = ot.astype(jnp.bfloat16).astype(jnp.float32)
        x = (unb + inb + otb).astype(jnp.bfloat16)
        h = jnp.dot(x, params["w1"].astype(jnp.bfloat16),
                    preferred_element_type=jnp.float32) + params["b1"]
        h = jnp.maximum(h, 0.0).astype(jnp.bfloat16)
        o = jnp.dot(h, params["w2"].astype(jnp.bfloat16),
                    preferred_element_type=jnp.float32) + params["b2"]
        return o.astype(jnp.bfloat16).astype(jnp.float32)

    ref_full = ref_forward(un_feat, in_feat, out_feat)
    ref = ref_full[idx]

    assert out.shape == (NUM_IDX, C)
    assert out_full.shape == (N, C)
    assert jnp.allclose(out, ref, atol=2e-2, rtol=2e-2)
    assert jnp.allclose(out_full, ref_full, atol=2e-2, rtol=2e-2)

    print("KERNEL_OK")
</pallas_src>

<mosaic_0001>
module attributes {stable_mosaic.version = 11 : i64} {
  func.func @_base_model_kernel(%arg0: i32, %arg1: memref<128x128xbf16, #tpu.memory_space<vmem>>, %arg2: memref<128x128xbf16, #tpu.memory_space<vmem>>, %arg3: memref<128x128xbf16, #tpu.memory_space<vmem>>, %arg4: memref<128x128xbf16, #tpu.memory_space<vmem>>, %arg5: memref<1x128xf32, #tpu.memory_space<vmem>>, %arg6: memref<128x128xbf16, #tpu.memory_space<vmem>>, %arg7: memref<1x128xf32, #tpu.memory_space<vmem>>, %arg8: memref<128x128xbf16, #tpu.memory_space<vmem>>) attributes {dimension_semantics = [#tpu.dimension_semantics<parallel>], iteration_bounds = array<i64: 2>, scalar_prefetch = 0 : i64, scratch_operands = 0 : i64, tpu.core_type = #tpu.core_type<tc>, window_params = [{transform_indices = @transform_0, window_bounds = array<i64: 128, 128>}, {transform_indices = @transform_1, window_bounds = array<i64: 128, 128>}, {transform_indices = @transform_2, window_bounds = array<i64: 128, 128>}, {pipeline_mode = #tpu.pipeline_mode<synchronous>, transform_indices = @transform_3, window_bounds = array<i64: 128, 128>}, {pipeline_mode = #tpu.pipeline_mode<synchronous>, transform_indices = @transform_4, window_bounds = array<i64: 1, 128>}, {pipeline_mode = #tpu.pipeline_mode<synchronous>, transform_indices = @transform_5, window_bounds = array<i64: 128, 128>}, {pipeline_mode = #tpu.pipeline_mode<synchronous>, transform_indices = @transform_6, window_bounds = array<i64: 1, 128>}, {transform_indices = @transform_7, window_bounds = array<i64: 128, 128>}]} {
    %c0 = arith.constant 0 : index
    %c0_0 = arith.constant 0 : index
    %0 = vector.load %arg1[%c0, %c0_0] : memref<128x128xbf16, #tpu.memory_space<vmem>>, vector<128x128xbf16>
    %1 = arith.extf %0 : vector<128x128xbf16> to vector<128x128xf32>
    %c0_1 = arith.constant 0 : index
    %c0_2 = arith.constant 0 : index
    %2 = vector.load %arg2[%c0_1, %c0_2] : memref<128x128xbf16, #tpu.memory_space<vmem>>, vector<128x128xbf16>
    %3 = arith.extf %2 : vector<128x128xbf16> to vector<128x128xf32>
    %4 = arith.addf %1, %3 : vector<128x128xf32>
    %c0_3 = arith.constant 0 : index
    %c0_4 = arith.constant 0 : index
    %5 = vector.load %arg3[%c0_3, %c0_4] : memref<128x128xbf16, #tpu.memory_space<vmem>>, vector<128x128xbf16>
    %6 = arith.extf %5 : vector<128x128xbf16> to vector<128x128xf32>
    %7 = arith.addf %4, %6 : vector<128x128xf32>
    %8 = arith.truncf %7 : vector<128x128xf32> to vector<128x128xbf16>
    %c0_5 = arith.constant 0 : index
    %c0_6 = arith.constant 0 : index
    %9 = vector.load %arg4[%c0_5, %c0_6] : memref<128x128xbf16, #tpu.memory_space<vmem>>, vector<128x128xbf16>
    %cst = arith.constant dense<0.000000e+00> : vector<128x128xf32>
    %10 = tpu.matmul %8, %9, %cst {dimension_numbers = #tpu.dot_dimension_numbers<[1], [0], [0], [1], [0, 0, 1, 1], [], []>} : vector<128x128xbf16>, vector<128x128xbf16>, vector<128x128xf32> -> vector<128x128xf32>
    %c0_7 = arith.constant 0 : index
    %c0_8 = arith.constant 0 : index
    %11 = vector.load %arg5[%c0_7, %c0_8] : memref<1x128xf32, #tpu.memory_space<vmem>>, vector<1x128xf32>
    %12 = vector.broadcast %11 : vector<1x128xf32> to vector<128x128xf32>
    %13 = arith.addf %10, %12 : vector<128x128xf32>
    %cst_9 = arith.constant 0.000000e+00 : f32
    %14 = vector.broadcast %cst_9 : f32 to vector<128x128xf32>
    %15 = arith.maximumf %13, %14 : vector<128x128xf32>
    %16 = arith.truncf %15 : vector<128x128xf32> to vector<128x128xbf16>
    %c0_10 = arith.constant 0 : index
    %c0_11 = arith.constant 0 : index
    %17 = vector.load %arg6[%c0_10, %c0_11] : memref<128x128xbf16, #tpu.memory_space<vmem>>, vector<128x128xbf16>
    %cst_12 = arith.constant dense<0.000000e+00> : vector<128x128xf32>
    %18 = tpu.matmul %16, %17, %cst_12 {dimension_numbers = #tpu.dot_dimension_numbers<[1], [0], [0], [1], [0, 0, 1, 1], [], []>} : vector<128x128xbf16>, vector<128x128xbf16>, vector<128x128xf32> -> vector<128x128xf32>
    %c0_13 = arith.constant 0 : index
    %c0_14 = arith.constant 0 : index
    %19 = vector.load %arg7[%c0_13, %c0_14] : memref<1x128xf32, #tpu.memory_space<vmem>>, vector<1x128xf32>
    %20 = vector.broadcast %19 : vector<1x128xf32> to vector<128x128xf32>
    %21 = arith.addf %18, %20 : vector<128x128xf32>
    %22 = arith.truncf %21 : vector<128x128xf32> to vector<128x128xbf16>
    %c0_15 = arith.constant 0 : index
    %c0_16 = arith.constant 0 : index
    %23 = vector.load %arg8[%c0_15, %c0_16] : memref<128x128xbf16, #tpu.memory_space<vmem>>, vector<128x128xbf16>
    tpu.vector_store %arg8[%c0_15, %c0_16], %22 {strides = array<i32>} : memref<128x128xbf16, #tpu.memory_space<vmem>>, vector<128x128xbf16>,
    return
  }
  func.func @transform_0(%arg0: i32) -> (i32, i32) {
    %c0_i32 = arith.constant 0 : i32
    %c0_i32_0 = arith.constant 0 : i32
    return %arg0, %c0_i32 : i32, i32
  }
  func.func @transform_1(%arg0: i32) -> (i32, i32) {
    %c0_i32 = arith.constant 0 : i32
    %c0_i32_0 = arith.constant 0 : i32
    return %arg0, %c0_i32 : i32, i32
  }
  func.func @transform_2(%arg0: i32) -> (i32, i32) {
    %c0_i32 = arith.constant 0 : i32
    %c0_i32_0 = arith.constant 0 : i32
    return %arg0, %c0_i32 : i32, i32
  }
  func.func @transform_3(%arg0: i32) -> (i32, i32) {
    %c0_i32 = arith.constant 0 : i32
    %c0_i32_0 = arith.constant 0 : i32
    %c0_i32_1 = arith.constant 0 : i32
    return %c0_i32, %c0_i32_0 : i32, i32
  }
  func.func @transform_4(%arg0: i32) -> (i32, i32) {
    %c0_i32 = arith.constant 0 : i32
    %c0_i32_0 = arith.constant 0 : i32
    %c0_i32_1 = arith.constant 0 : i32
    return %c0_i32, %c0_i32_0 : i32, i32
  }
  func.func @transform_5(%arg0: i32) -> (i32, i32) {
    %c0_i32 = arith.constant 0 : i32
    %c0_i32_0 = arith.constant 0 : i32
    %c0_i32_1 = arith.constant 0 : i32
    return %c0_i32, %c0_i32_0 : i32, i32
  }
  func.func @transform_6(%arg0: i32) -> (i32, i32) {
    %c0_i32 = arith.constant 0 : i32
    %c0_i32_0 = arith.constant 0 : i32
    %c0_i32_1 = arith.constant 0 : i32
    return %c0_i32, %c0_i32_0 : i32, i32
  }
  func.func @transform_7(%arg0: i32) -> (i32, i32) {
    %c0_i32 = arith.constant 0 : i32
    %c0_i32_0 = arith.constant 0 : i32
    return %arg0, %c0_i32 : i32, i32
  }
}

</mosaic_0001>

<llo_original>
// kernel: tpu_custom_call.1
$region0: #{tpu_custom_call.1}
  #allocation0 [shape = 'u32[]', space=smem, size = 0x4, offset = 0x4, fixed_abs, tag = 'smem constant byte address 0x4 - core index']
  #allocation1 [shape = 'u32[144,128]{1,0:T(1,128)}', space=vmem, size = 0x12000, scoped, tag = 'internal scratch']
  %s0 = inlined_call_operand.hbm [shape: bf16[256,128], index: 0, kind: input, shape index: {}]
  %s1 = inlined_call_operand.hbm [shape: bf16[256,128], index: 1, kind: input, shape index: {}]
  %s2 = inlined_call_operand.hbm [shape: bf16[256,128], index: 2, kind: input, shape index: {}]
  %s3 = inlined_call_operand.hbm [shape: bf16[128,128], index: 3, kind: input, shape index: {}]
  %s4 = inlined_call_operand.vmem [shape: f32[1,128], index: 4, kind: input, shape index: {}]
  %s5 = inlined_call_operand.hbm [shape: bf16[128,128], index: 5, kind: input, shape index: {}]
  %s6 = inlined_call_operand.vmem [shape: f32[1,128], index: 6, kind: input, shape index: {}]
  %s7 = inlined_call_operand.hbm [shape: bf16[256,128], index: 7, kind: output, shape index: {}]
  %s8 = sld [smem:[#allocation0]]
  $region81: #{tpu_custom_call.1} parent=0
    _
  %s10 = ssub.s32 1, %s8
  %s11 = scalar_select 0, %s10, %s8
  $region1: #{tpu_custom_call.1} parent=0
    #allocation2 [shape = 'u8[65536]{0}', space=vmem, size = 0x10000, scoped, tag = 'input window, operand 0']
    #allocation3 [shape = 's32[2]{0}', space=sflag, size = 0x8, scoped, tag = 'scoped memory for tpu_custom_call.1']
    #allocation4 [shape = 's32[2]{0}', space=sflag, size = 0x8, scoped, tag = 'scoped memory for tpu_custom_call.1']
    #allocation5 [shape = 'u8[65536]{0}', space=vmem, size = 0x10000, scoped, tag = 'input window, operand 1']
    #allocation6 [shape = 's32[2]{0}', space=sflag, size = 0x8, scoped, tag = 'scoped memory for tpu_custom_call.1']
    #allocation7 [shape = 'u8[65536]{0}', space=vmem, size = 0x10000, scoped, tag = 'input window, operand 2']
    #allocation8 [shape = 'u8[32768]{0}', space=vmem, size = 0x8000, scoped, tag = 'input window, operand 3, single buffered']
    #allocation9 [shape = 's32[1]{0}', space=sflag, size = 0x4, scoped, tag = 'scoped memory for tpu_custom_call.1']
    #allocation10 [shape = 'u8[32768]{0}', space=vmem, size = 0x8000, scoped, tag = 'input window, operand 5, single buffered']
    #allocation11 [shape = 'u8[65536]{0}', space=vmem, size = 0x10000, scoped, tag = 'output window, operand 0']
    %12 = vsyncpa [#allocation3], 0
    %s13 = scalar_lea.sflag [#allocation3], 1
    %14 = vsyncpa %s13, 0
    %15 = vsyncpa [#allocation6], 0
    %s16 = scalar_lea.sflag [#allocation6], 1
    %17 = vsyncpa %s16, 0
    %18 = vsyncpa [#allocation9], 0
    %19 = vsyncpa [#allocation4], 0
    %s20 = scalar_lea.sflag [#allocation4], 1
    %21 = vsyncpa %s20, 0
    loop: start=0, step=1, limit=4
    $region2: #{tpu_custom_call.1} parent=1 // loop_pre_header
      _
    $region3: #{tpu_custom_call.1} parent=1 // loop_header
      %s23 = sphi 0, %s27
      %p24 = scmp.ge.s32.totalorder %s23, 4
      %s33 = sphi 0, %s35
      %s36 = sphi 0, %s33
      %s37 = sphi 0, %s36
      %s53 = sphi 0, %s37
      %s59 = sphi 0, %s61
      %s62 = sphi 0, %s59
      %s63 = sphi 0, %s62
      %s79 = sphi 0, %s63
      %s85 = sphi 0, %s87
      %s88 = sphi 0, %s85
      %s89 = sphi 0, %s88
      %s105 = sphi 0, %s89
      %s109 = sphi 0, %s109
      %s111 = sphi 0, %s109
      %s112 = sphi 0, %s111
      %s126 = sphi 0, %s112
      %s130 = sphi 0, %s130
      %s132 = sphi 0, %s130
      %s133 = sphi 0, %s132
      %s147 = sphi 0, %s133
      %s151 = sphi 0, %s151
      %s153 = sphi 0, %s151
      %s154 = sphi 0, %s153
      %s168 = sphi 0, %s154
      %s172 = sphi 0, %s172
      %s174 = sphi 0, %s172
      %s175 = sphi 0, %s174
      %s189 = sphi 0, %s175
      %s195 = sphi 0, %s197
      %s198 = sphi 0, %s195
      %s199 = sphi 0, %s198
      %s215 = sphi 0, %s199
    $region4: #{tpu_custom_call.1} parent=1 // loop_header_branch
      %26 = sbr.rel (%p24) target = $region8
    $region5: #{tpu_custom_call.1} parent=1 // loop_body
      %s28 = ssub.s32 %s23, 1
      %s29 = ssub.s32 %s23, 2
      %s30 = sadd.s32 %s23, 1
      %s31 = ssub.s32 %s23, %s30
      %p32 = scmp.eq.s32.totalorder %s31, 0
      %s34 = sadd.s32 %s33, 1
      %s35 = scalar_select %p32, %s33, %s34
      %p38 = pneg %p32
      %p39 = scmp.eq.s32.totalorder %s23, 1
      %p40 = por %p38, %p39
      %p41 = scmp.ne.s32.totalorder %s33, %s36
      %p42 = scmp.eq.s32.totalorder %s23, 0
      %p43 = por %p41, %p42
      %p44 = scmp.ne.s32.totalorder %s33, %s36
      %p45 = scmp.eq.s32.totalorder %s28, 1
      %p46 = por %p44, %p45
      %p47 = scmp.ne.s32.totalorder %s36, %s37
      %p48 = scmp.eq.s32.totalorder %s28, 0
      %p49 = por %p47, %p48
      %p50 = scmp.ne.s32.totalorder %s36, %s37
      %p51 = scmp.eq.s32.totalorder %s29, 1
      %p52 = por %p50, %p51
      %p54 = scmp.ne.s32.totalorder %s37, %s53
      %p55 = scmp.eq.s32.totalorder %s29, 0
      %p56 = por %p54, %p55
      %s57 = ssub.s32 %s23, %s30
      %p58 = scmp.eq.s32.totalorder %s57, 0
      %s60 = sadd.s32 %s59, 1
      %s61 = scalar_select %p58, %s59, %s60
      %p64 = pneg %p58
      %p65 = scmp.eq.s32.totalorder %s23, 1
      %p66 = por %p64, %p65
      %p67 = scmp.ne.s32.totalorder %s59, %s62
      %p68 = scmp.eq.s32.totalorder %s23, 0
      %p69 = por %p67, %p68
      %p70 = scmp.ne.s32.totalorder %s59, %s62
      %p71 = scmp.eq.s32.totalorder %s28, 1
      %p72 = por %p70, %p71
      %p73 = scmp.ne.s32.totalorder %s62, %s63
      %p74 = scmp.eq.s32.totalorder %s28, 0
      %p75 = por %p73, %p74
      %p76 = scmp.ne.s32.totalorder %s62, %s63
      %p77 = scmp.eq.s32.totalorder %s29, 1
      %p78 = por %p76, %p77
      %p80 = scmp.ne.s32.totalorder %s63, %s79
      %p81 = scmp.eq.s32.totalorder %s29, 0
      %p82 = por %p80, %p81
      %s83 = ssub.s32 %s23, %s30
      %p84 = scmp.eq.s32.totalorder %s83, 0
      %s86 = sadd.s32 %s85, 1
      %s87 = scalar_select %p84, %s85, %s86
      %p90 = pneg %p84
      %p91 = scmp.eq.s32.totalorder %s23, 1
      %p92 = por %p90, %p91
      %p93 = scmp.ne.s32.totalorder %s85, %s88
      %p94 = scmp.eq.s32.totalorder %s23, 0
      %p95 = por %p93, %p94
      %p96 = scmp.ne.s32.totalorder %s85, %s88
      %p97 = scmp.eq.s32.totalorder %s28, 1
      %p98 = por %p96, %p97
      %p99 = scmp.ne.s32.totalorder %s88, %s89
      %p100 = scmp.eq.s32.totalorder %s28, 0
      %p101 = por %p99, %p100
      %p102 = scmp.ne.s32.totalorder %s88, %s89
      %p103 = scmp.eq.s32.totalorder %s29, 1
      %p104 = por %p102, %p103
      %p106 = scmp.ne.s32.totalorder %s89, %s105
      %p107 = scmp.eq.s32.totalorder %s29, 0
      %p108 = por %p106, %p107
      %s110 = sadd.s32 %s109, 1
      %p113 = scmp.eq.s32.totalorder %s23, 1
      %p114 = scmp.ne.s32.totalorder %s109, %s111
      %p115 = scmp.eq.s32.totalorder %s23, 0
      %p116 = por %p114, %p115
      %p117 = scmp.ne.s32.totalorder %s109, %s111
      %p118 = scmp.eq.s32.totalorder %s28, 1
      %p119 = por %p117, %p118
      %p120 = scmp.ne.s32.totalorder %s111, %s112
      %p121 = scmp.eq.s32.totalorder %s28, 0
      %p122 = por %p120, %p121
      %p123 = scmp.ne.s32.totalorder %s111, %s112
      %p124 = scmp.eq.s32.totalorder %s29, 1
      %p125 = por %p123, %p124
      %p127 = scmp.ne.s32.totalorder %s112, %s126
      %p128 = scmp.eq.s32.totalorder %s29, 0
      %p129 = por %p127, %p128
      %s131 = sadd.s32 %s130, 1
      %p134 = scmp.eq.s32.totalorder %s23, 1
      %p135 = scmp.ne.s32.totalorder %s130, %s132
      %p136 = scmp.eq.s32.totalorder %s23, 0
      %p137 = por %p135, %p136
      %p138 = scmp.ne.s32.totalorder %s130, %s132
      %p139 = scmp.eq.s32.totalorder %s28, 1
      %p140 = por %p138, %p139
      %p141 = scmp.ne.s32.totalorder %s132, %s133
      %p142 = scmp.eq.s32.totalorder %s28, 0
      %p143 = por %p141, %p142
      %p144 = scmp.ne.s32.totalorder %s132, %s133
      %p145 = scmp.eq.s32.totalorder %s29, 1
      %p146 = por %p144, %p145
      %p148 = scmp.ne.s32.totalorder %s133, %s147
      %p149 = scmp.eq.s32.totalorder %s29, 0
      %p150 = por %p148, %p149
      %s152 = sadd.s32 %s151, 1
      %p155 = scmp.eq.s32.totalorder %s23, 1
      %p156 = scmp.ne.s32.totalorder %s151, %s153
      %p157 = scmp.eq.s32.totalorder %s23, 0
      %p158 = por %p156, %p157
      %p159 = scmp.ne.s32.totalorder %s151, %s153
      %p160 = scmp.eq.s32.totalorder %s28, 1
      %p161 = por %p159, %p160
      %p162 = scmp.ne.s32.totalorder %s153, %s154
      %p163 = scmp.eq.s32.totalorder %s28, 0
      %p164 = por %p162, %p163
      %p165 = scmp.ne.s32.totalorder %s153, %s154
      %p166 = scmp.eq.s32.totalorder %s29, 1
      %p167 = por %p165, %p166
      %p169 = scmp.ne.s32.totalorder %s154, %s168
      %p170 = scmp.eq.s32.totalorder %s29, 0
      %p171 = por %p169, %p170
      %s173 = sadd.s32 %s172, 1
      %p176 = scmp.eq.s32.totalorder %s23, 1
      %p177 = scmp.ne.s32.totalorder %s172, %s174
      %p178 = scmp.eq.s32.totalorder %s23, 0
      %p179 = por %p177, %p178
      %p180 = scmp.ne.s32.totalorder %s172, %s174
      %p181 = scmp.eq.s32.totalorder %s28, 1
      %p182 = por %p180, %p181
      %p183 = scmp.ne.s32.totalorder %s174, %s175
      %p184 = scmp.eq.s32.totalorder %s28, 0
      %p185 = por %p183, %p184
      %p186 = scmp.ne.s32.totalorder %s174, %s175
      %p187 = scmp.eq.s32.totalorder %s29, 1
      %p188 = por %p186, %p187
      %p190 = scmp.ne.s32.totalorder %s175, %s189
      %p191 = scmp.eq.s32.totalorder %s29, 0
      %p192 = por %p190, %p191
      %s193 = ssub.s32 %s23, %s30
      %p194 = scmp.eq.s32.totalorder %s193, 0
      %s196 = sadd.s32 %s195, 1
      %s197 = scalar_select %p194, %s195, %s196
      %p200 = pneg %p194
      %p201 = scmp.eq.s32.totalorder %s23, 1
      %p202 = por %p200, %p201
      %p203 = scmp.ne.s32.totalorder %s195, %s198
      %p204 = scmp.eq.s32.totalorder %s23, 0
      %p205 = por %p203, %p204
      %p206 = scmp.ne.s32.totalorder %s195, %s198
      %p207 = scmp.eq.s32.totalorder %s28, 1
      %p208 = por %p206, %p207
      %p209 = scmp.ne.s32.totalorder %s198, %s199
      %p210 = scmp.eq.s32.totalorder %s28, 0
      %p211 = por %p209, %p210
      %p212 = scmp.ne.s32.totalorder %s198, %s199
      %p213 = scmp.eq.s32.totalorder %s29, 1
      %p214 = por %p212, %p213
      %p216 = scmp.ne.s32.totalorder %s199, %s215
      %p217 = scmp.eq.s32.totalorder %s29, 0
      %p218 = por %p216, %p217
      %p219 = scmp.le.s32.totalorder 1, %s23
      %p220 = scmp.lt.s32.totalorder %s23, 3
      %p221 = pnand %p219, %p220
      %p222 = pneg %p221
      // Predicated region
      $region9: #{tpu_custom_call.1} parent=5 // pred_check
        _
      $region10: #{tpu_custom_call.1} parent=5 // pred_check_branch
        %224 = sbr.rel (%p221) target = $region12
      $region11: #{tpu_custom_call.1} parent=5 // pred_region
        %s225 = ssub.s32 %s23, 1
        // Predicated region
        $region13: #{tpu_custom_call.1} parent=11 // pred_check
          %p226 = pneg %p122
        $region14: #{tpu_custom_call.1} parent=11 // pred_check_branch
          %228 = sbr.rel (%p226) target = $region16
        $region15: #{tpu_custom_call.1} parent=11 // pred_region
          %s230 = ssub.s32 1024, 1024
          %231 = vsyncadd [#allocation9], %s230
          %s232 = sshll.u32 [#allocation8], 4
          %s233 = int_to_ptr.vmem [resolvable:$true] %s232
          %238 = dma.hbm_to_vmem [thread:$0]  %s3, 1024, %s233, [#allocation9], 64, 64, 4
        $region16: #{tpu_custom_call.1} parent=11 // pred_fallthru
          _
        // Predicated region
        $region17: #{tpu_custom_call.1} parent=11 // pred_check
          %p239 = pneg %p143
        $region18: #{tpu_custom_call.1} parent=11 // pred_check_branch
          %241 = sbr.rel (%p239) target = $region20
        $region19: #{tpu_custom_call.1} parent=11 // pred_region
          _
        $region20: #{tpu_custom_call.1} parent=11 // pred_fallthru
          _
        // Predicated region
        $region21: #{tpu_custom_call.1} parent=11 // pred_check
          %p242 = pneg %p164
        $region22: #{tpu_custom_call.1} parent=11 // pred_check_branch
          %244 = sbr.rel (%p242) target = $region24
        $region23: #{tpu_custom_call.1} parent=11 // pred_region
          %s246 = ssub.s32 1024, 1024
          %247 = vsyncadd [#allocation9], %s246
          %s248 = sshll.u32 [#allocation10], 4
          %s249 = int_to_ptr.vmem [resolvable:$true] %s248
          %254 = dma.hbm_to_vmem [thread:$0]  %s5, 1024, %s249, [#allocation9], 64, 64, 4
        $region24: #{tpu_custom_call.1} parent=11 // pred_fallthru
          _
        // Predicated region
        $region25: #{tpu_custom_call.1} parent=11 // pred_check
          %p255 = pneg %p185
        $region26: #{tpu_custom_call.1} parent=11 // pred_check_branch
          %257 = sbr.rel (%p255) target = $region28
        $region27: #{tpu_custom_call.1} parent=11 // pred_region
          _
        $region28: #{tpu_custom_call.1} parent=11 // pred_fallthru
          _
      $region12: #{tpu_custom_call.1} parent=5 // pred_fallthru
        _
      %p258 = scmp.lt.s32.totalorder %s23, 2
      // Predicated region
      $region29: #{tpu_custom_call.1} parent=5 // pred_check
        %p259 = pneg %p258
      $region30: #{tpu_custom_call.1} parent=5 // pred_check_branch
        %261 = sbr.rel (%p259) target = $region32
      $region31: #{tpu_custom_call.1} parent=5 // pred_region
        // Predicated region
        $region33: #{tpu_custom_call.1} parent=31 // pred_check
          %p262 = pneg %p43
        $region34: #{tpu_custom_call.1} parent=31 // pred_check_branch
          %264 = sbr.rel (%p262) target = $region36
        $region35: #{tpu_custom_call.1} parent=31 // pred_region
          %s265 = sand.u32 %s33, 1
          %s266 = scalar_lea.sflag [#allocation3], %s265
          %s267 = sand.u32 %s33, 1
          %s268 = smul.addr %s267, 64
          %s269 = scalar_lea.vmem [#allocation2], %s268
          %s270 = smul.u32 16, %s23
          %s272 = ssub.s32 1024, 1024
          %273 = vsyncadd %s266, %s272
          %s274 = smul.addr %s270, 64
          %s275 = scalar_lea.hbm %s0, %s274
          %s276 = sshll.u32 %s269, 4
          %s277 = int_to_ptr.vmem [resolvable:$true] %s276
          %282 = dma.hbm_to_vmem [thread:$0]  %s275, 1024, %s277, %s266, 64, 64, 4
        $region36: #{tpu_custom_call.1} parent=31 // pred_fallthru
          _
        // Predicated region
        $region37: #{tpu_custom_call.1} parent=31 // pred_check
          %p283 = pneg %p69
        $region38: #{tpu_custom_call.1} parent=31 // pred_check_branch
          %285 = sbr.rel (%p283) target = $region40
        $region39: #{tpu_custom_call.1} parent=31 // pred_region
          %s286 = sand.u32 %s23, 1
          %s287 = scalar_lea.sflag [#allocation6], %s286
          %s288 = sand.u32 %s59, 1
          %s289 = smul.addr %s288, 64
          %s290 = scalar_lea.vmem [#allocation5], %s289
          %s291 = smul.u32 16, %s23
          %s293 = ssub.s32 1024, 1024
          %294 = vsyncadd %s287, %s293
          %s295 = smul.addr %s291, 64
          %s296 = scalar_lea.hbm %s1, %s295
          %s297 = sshll.u32 %s290, 4
          %s298 = int_to_ptr.vmem [resolvable:$true] %s297
          %303 = dma.hbm_to_vmem [thread:$0]  %s296, 1024, %s298, %s287, 64, 64, 4
        $region40: #{tpu_custom_call.1} parent=31 // pred_fallthru
          _
        // Predicated region
        $region41: #{tpu_custom_call.1} parent=31 // pred_check
          %p304 = pneg %p95
        $region42: #{tpu_custom_call.1} parent=31 // pred_check_branch
          %306 = sbr.rel (%p304) target = $region44
        $region43: #{tpu_custom_call.1} parent=31 // pred_region
          %s307 = sand.u32 %s23, 1
          %s308 = scalar_lea.sflag [#allocation6], %s307
          %s309 = sand.u32 %s85, 1
          %s310 = smul.addr %s309, 64
          %s311 = scalar_lea.vmem [#allocation7], %s310
          %s312 = smul.u32 16, %s23
          %s314 = ssub.s32 1024, 1024
          %315 = vsyncadd %s308, %s314
          %s316 = smul.addr %s312, 64
          %s317 = scalar_lea.hbm %s2, %s316
          %s318 = sshll.u32 %s311, 4
          %s319 = int_to_ptr.vmem [resolvable:$true] %s318
          %324 = dma.hbm_to_vmem [thread:$0]  %s317, 1024, %s319, %s308, 64, 64, 4
        $region44: #{tpu_custom_call.1} parent=31 // pred_fallthru
          _
      $region32: #{tpu_custom_call.1} parent=5 // pred_fallthru
        _
      %p325 = scmp.le.s32.totalorder 1, %s23
      %p326 = scmp.lt.s32.totalorder %s23, 3
      %p327 = pnand %p325, %p326
      %p328 = pneg %p327
      // Predicated region
      $region45: #{tpu_custom_call.1} parent=5 // pred_check
        _
      $region46: #{tpu_custom_call.1} parent=5 // pred_check_branch
        %330 = sbr.rel (%p327) target = $region48
      $region47: #{tpu_custom_call.1} parent=5 // pred_region
        %s331 = ssub.s32 %s23, 1
        %s332 = sand.u32 %s36, 1
        %s333 = scalar_lea.sflag [#allocation3], %s332
        %s334 = sand.u32 %s36, 1
        %s335 = smul.addr %s334, 64
        %s336 = scalar_lea.vmem [#allocation2], %s335
        // Predicated region
        $region49: #{tpu_custom_call.1} parent=47 // pred_check
          %p337 = pneg %p49
        $region50: #{tpu_custom_call.1} parent=47 // pred_check_branch
          %339 = sbr.rel (%p337) target = $region52
        $region51: #{tpu_custom_call.1} parent=47 // pred_region
          %340 = dma.done %s333, 1024
        $region52: #{tpu_custom_call.1} parent=47 // pred_fallthru
          _
        %s341 = sand.u32 %s28, 1
        %s342 = scalar_lea.sflag [#allocation6], %s341
        %s343 = sand.u32 %s62, 1
        %s344 = smul.addr %s343, 64
        %s345 = scalar_lea.vmem [#allocation5], %s344
        // Predicated region
        $region53: #{tpu_custom_call.1} parent=47 // pred_check
          %p346 = pneg %p75
        $region54: #{tpu_custom_call.1} parent=47 // pred_check_branch
          %348 = sbr.rel (%p346) target = $region56
        $region55: #{tpu_custom_call.1} parent=47 // pred_region
          %349 = dma.done %s342, 1024
        $region56: #{tpu_custom_call.1} parent=47 // pred_fallthru
          _
        %s350 = sand.u32 %s28, 1
        %s351 = scalar_lea.sflag [#allocation6], %s350
        %s352 = sand.u32 %s88, 1
        %s353 = smul.addr %s352, 64
        %s354 = scalar_lea.vmem [#allocation7], %s353
        // Predicated region
        $region57: #{tpu_custom_call.1} parent=47 // pred_check
          %p355 = pneg %p101
        $region58: #{tpu_custom_call.1} parent=47 // pred_check_branch
          %357 = sbr.rel (%p355) target = $region60
        $region59: #{tpu_custom_call.1} parent=47 // pred_region
          %358 = dma.done %s351, 1024
        $region60: #{tpu_custom_call.1} parent=47 // pred_fallthru
          _
        // Predicated region
        $region61: #{tpu_custom_call.1} parent=47 // pred_check
          %p359 = pneg %p122
        $region62: #{tpu_custom_call.1} parent=47 // pred_check_branch
          %361 = sbr.rel (%p359) target = $region64
        $region63: #{tpu_custom_call.1} parent=47 // pred_region
          %362 = dma.done [#allocation9], 1024
        $region64: #{tpu_custom_call.1} parent=47 // pred_fallthru
          _
        // Predicated region
        $region65: #{tpu_custom_call.1} parent=47 // pred_check
          %p363 = pneg %p164
        $region66: #{tpu_custom_call.1} parent=47 // pred_check_branch
          %365 = sbr.rel (%p363) target = $region68
        $region67: #{tpu_custom_call.1} parent=47 // pred_region
          %366 = dma.done [#allocation9], 1024
        $region68: #{tpu_custom_call.1} parent=47 // pred_fallthru
          _
        %s367 = sand.u32 %s36, 1
        %s368 = scalar_lea.sflag [#allocation3], %s367
        %s369 = sand.u32 %s36, 1
        %s370 = smul.addr %s369, 64
        %s371 = scalar_lea.vmem [#allocation2], %s370
        %p372 = pneg %p49
        %p373 = pneg %p46
        %s374 = sand.u32 %s28, 1
        %s375 = scalar_lea.sflag [#allocation6], %s374
        %s376 = sand.u32 %s62, 1
        %s377 = smul.addr %s376, 64
        %s378 = scalar_lea.vmem [#allocation5], %s377
        %p379 = pneg %p75
        %p380 = pneg %p72
        %s381 = sand.u32 %s28, 1
        %s382 = scalar_lea.sflag [#allocation6], %s381
        %s383 = sand.u32 %s88, 1
        %s384 = smul.addr %s383, 64
        %s385 = scalar_lea.vmem [#allocation7], %s384
        %p386 = pneg %p101
        %p387 = pneg %p98
        %p388 = pneg %p122
        %p389 = pneg %p119
        %p390 = pneg %p143
        %p391 = pneg %p140
        %p392 = pneg %p164
        %p393 = pneg %p161
        %p394 = pneg %p185
        %p395 = pneg %p182
        %p396 = pneg %p211
        %p397 = pneg %p208
        %s398 = sand.u32 %s198, 1
        %s399 = scalar_lea.sflag [#allocation4], %s398
        %s400 = sand.u32 %s198, 1
        %s401 = smul.addr %s400, 64
        %s402 = scalar_lea.vmem [#allocation11], %s401
        %s403 = smul.u32 16, %s28
        %s404 = smul.u32 16, %s28
        %s405 = smul.u32 16, %s28
        %s406 = smul.u32 16, %s28
        %v408 = vld [vmem:[%s336] sm:$0xf]
        %v409 = vld [vmem:[%s336 + $0x4] sm:$0xf]
        %v410 = vld [vmem:[%s336 + $0x8] sm:$0xf]
        %v411 = vld [vmem:[%s336 + $0xc] sm:$0xf]
        %v412 = vld [vmem:[%s336 + $0x10] sm:$0xf]
        %v413 = vld [vmem:[%s336 + $0x14] sm:$0xf]
        %v414 = vld [vmem:[%s336 + $0x18] sm:$0xf]
        %v415 = vld [vmem:[%s336 + $0x1c] sm:$0xf]
        %v416 = vld [vmem:[%s336 + $0x20] sm:$0xf]
        %v417 = vld [vmem:[%s336 + $0x24] sm:$0xf]
        %v418 = vld [vmem:[%s336 + $0x28] sm:$0xf]
        %v419 = vld [vmem:[%s336 + $0x2c] sm:$0xf]
        %v420 = vld [vmem:[%s336 + $0x30] sm:$0xf]
        %v421 = vld [vmem:[%s336 + $0x34] sm:$0xf]
        %v422 = vld [vmem:[%s336 + $0x38] sm:$0xf]
        %v423 = vld [vmem:[%s336 + $0x3c] sm:$0xf]
        %v424 = vunpack.c.l.bf16 %v408
        %v425 = vunpack.c.l.bf16 %v409
        %v426 = vunpack.c.l.bf16 %v410
        %v427 = vunpack.c.l.bf16 %v411
        %v428 = vunpack.c.l.bf16 %v412
        %v429 = vunpack.c.l.bf16 %v413
        %v430 = vunpack.c.l.bf16 %v414
        %v431 = vunpack.c.l.bf16 %v415
        %v432 = vunpack.c.l.bf16 %v416
        %v433 = vunpack.c.l.bf16 %v417
        %v434 = vunpack.c.l.bf16 %v418
        %v435 = vunpack.c.l.bf16 %v419
        %v436 = vunpack.c.l.bf16 %v420
        %v437 = vunpack.c.l.bf16 %v421
        %v438 = vunpack.c.l.bf16 %v422
        %v439 = vunpack.c.l.bf16 %v423
        %v440 = vld [vmem:[%s345] sm:$0xf]
        %v441 = vld [vmem:[%s345 + $0x4] sm:$0xf]
        %v442 = vld [vmem:[%s345 + $0x8] sm:$0xf]
        %v443 = vld [vmem:[%s345 + $0xc] sm:$0xf]
        %v444 = vld [vmem:[%s345 + $0x10] sm:$0xf]
        %v445 = vld [vmem:[%s345 + $0x14] sm:$0xf]
        %v446 = vld [vmem:[%s345 + $0x18] sm:$0xf]
        %v447 = vld [vmem:[%s345 + $0x1c] sm:$0xf]
        %v448 = vld [vmem:[%s345 + $0x20] sm:$0xf]
        %v449 = vld [vmem:[%s345 + $0x24] sm:$0xf]
        %v450 = vld [vmem:[%s345 + $0x28] sm:$0xf]
        %v451 = vld [vmem:[%s345 + $0x2c] sm:$0xf]
        %v452 = vld [vmem:[%s345 + $0x30] sm:$0xf]
        %v453 = vld [vmem:[%s345 + $0x34] sm:$0xf]
        %v454 = vld [vmem:[%s345 + $0x38] sm:$0xf]
        %v455 = vld [vmem:[%s345 + $0x3c] sm:$0xf]
        %v456 = vunpack.c.l.bf16 %v440
        %v457 = vunpack.c.l.bf16 %v441
        %v458 = vunpack.c.l.bf16 %v442
        %v459 = vunpack.c.l.bf16 %v443
        %v460 = vunpack.c.l.bf16 %v444
        %v461 = vunpack.c.l.bf16 %v445
        %v462 = vunpack.c.l.bf16 %v446
        %v463 = vunpack.c.l.bf16 %v447
        %v464 = vunpack.c.l.bf16 %v448
        %v465 = vunpack.c.l.bf16 %v449
        %v466 = vunpack.c.l.bf16 %v450
        %v467 = vunpack.c.l.bf16 %v451
        %v468 = vunpack.c.l.bf16 %v452
        %v469 = vunpack.c.l.bf16 %v453
        %v470 = vunpack.c.l.bf16 %v454
        %v471 = vunpack.c.l.bf16 %v455
        %v472 = vadd.f32 %v424, %v456
        %v473 = vadd.f32 %v425, %v457
        %v474 = vadd.f32 %v426, %v458
        %v475 = vadd.f32 %v427, %v459
        %v476 = vadd.f32 %v428, %v460
        %v477 = vadd.f32 %v429, %v461
        %v478 = vadd.f32 %v430, %v462
        %v479 = vadd.f32 %v431, %v463
        %v480 = vadd.f32 %v432, %v464
        %v481 = vadd.f32 %v433, %v465
        %v482 = vadd.f32 %v434, %v466
        %v483 = vadd.f32 %v435, %v467
        %v484 = vadd.f32 %v436, %v468
        %v485 = vadd.f32 %v437, %v469
        %v486 = vadd.f32 %v438, %v470
        %v487 = vadd.f32 %v439, %v471
        %v488 = vld [vmem:[%s354] sm:$0xf]
        %v489 = vld [vmem:[%s354 + $0x4] sm:$0xf]
        %v490 = vld [vmem:[%s354 + $0x8] sm:$0xf]
        %v491 = vld [vmem:[%s354 + $0xc] sm:$0xf]
        %v492 = vld [vmem:[%s354 + $0x10] sm:$0xf]
        %v493 = vld [vmem:[%s354 + $0x14] sm:$0xf]
        %v494 = vld [vmem:[%s354 + $0x18] sm:$0xf]
        %v495 = vld [vmem:[%s354 + $0x1c] sm:$0xf]
        %v496 = vld [vmem:[%s354 + $0x20] sm:$0xf]
        %v497 = vld [vmem:[%s354 + $0x24] sm:$0xf]
        %v498 = vld [vmem:[%s354 + $0x28] sm:$0xf]
        %v499 = vld [vmem:[%s354 + $0x2c] sm:$0xf]
        %v500 = vld [vmem:[%s354 + $0x30] sm:$0xf]
        %v501 = vld [vmem:[%s354 + $0x34] sm:$0xf]
        %v502 = vld [vmem:[%s354 + $0x38] sm:$0xf]
        %v503 = vld [vmem:[%s354 + $0x3c] sm:$0xf]
        %v504 = vunpack.c.l.bf16 %v488
        %v505 = vunpack.c.l.bf16 %v489
        %v506 = vunpack.c.l.bf16 %v490
        %v507 = vunpack.c.l.bf16 %v491
        %v508 = vunpack.c.l.bf16 %v492
        %v509 = vunpack.c.l.bf16 %v493
        %v510 = vunpack.c.l.bf16 %v494
        %v511 = vunpack.c.l.bf16 %v495
        %v512 = vunpack.c.l.bf16 %v496
        %v513 = vunpack.c.l.bf16 %v497
        %v514 = vunpack.c.l.bf16 %v498
        %v515 = vunpack.c.l.bf16 %v499
        %v516 = vunpack.c.l.bf16 %v500
        %v517 = vunpack.c.l.bf16 %v501
        %v518 = vunpack.c.l.bf16 %v502
        %v519 = vunpack.c.l.bf16 %v503
        %v520 = vadd.f32 %v472, %v504
        %v521 = vadd.f32 %v473, %v505
        %v522 = vadd.f32 %v474, %v506
        %v523 = vadd.f32 %v475, %v507
        %v524 = vadd.f32 %v476, %v508
        %v525 = vadd.f32 %v477, %v509
        %v526 = vadd.f32 %v478, %v510
        %v527 = vadd.f32 %v479, %v511
        %v528 = vadd.f32 %v480, %v512
        %v529 = vadd.f32 %v481, %v513
        %v530 = vadd.f32 %v482, %v514
        %v531 = vadd.f32 %v483, %v515
        %v532 = vadd.f32 %v484, %v516
        %v533 = vadd.f32 %v485, %v517
        %v534 = vadd.f32 %v486, %v518
        %v535 = vadd.f32 %v487, %v519
        %v536 = vpack.c.bf16 %v521, %v520
        %v537 = vpack.c.bf16 %v523, %v522
        %v538 = vpack.c.bf16 %v525, %v524
        %v539 = vpack.c.bf16 %v527, %v526
        %v540 = vpack.c.bf16 %v529, %v528
        %v541 = vpack.c.bf16 %v531, %v530
        %v542 = vpack.c.bf16 %v533, %v532
        %v543 = vpack.c.bf16 %v535, %v534
        %v544 = vld [vmem:[#allocation8] sm:$0xf]
        %v545 = vld [vmem:[#allocation8 + $0x4] sm:$0xf]
        %v546 = vld [vmem:[#allocation8 + $0x8] sm:$0xf]
        %v547 = vld [vmem:[#allocation8 + $0xc] sm:$0xf]
        %v548 = vld [vmem:[#allocation8 + $0x10] sm:$0xf]
        %v549 = vld [vmem:[#allocation8 + $0x14] sm:$0xf]
        %v550 = vld [vmem:[#allocation8 + $0x18] sm:$0xf]
        %v551 = vld [vmem:[#allocation8 + $0x1c] sm:$0xf]
        %v552 = vld [vmem:[#allocation8 + $0x20] sm:$0xf]
        %v553 = vld [vmem:[#allocation8 + $0x24] sm:$0xf]
        %v554 = vld [vmem:[#allocation8 + $0x28] sm:$0xf]
        %v555 = vld [vmem:[#allocation8 + $0x2c] sm:$0xf]
        %v556 = vld [vmem:[#allocation8 + $0x30] sm:$0xf]
        %v557 = vld [vmem:[#allocation8 + $0x34] sm:$0xf]
        %v558 = vld [vmem:[#allocation8 + $0x38] sm:$0xf]
        %v559 = vld [vmem:[#allocation8 + $0x3c] sm:$0xf]
        %v560 = vld [vmem:[%s4] sm:$0x1]
        %v562 = vlaneseq
        %v563 = vshrl.u32 %v562, 7
        %v564 = vsub.s32 0, %v563
        %v565 = vrot.slane %v560, %v564
        %v583 = vunpack.c.l.b16 %v544
        %v584 = vunpack.c.l.b16 %v545
        %v585 = vunpack.c.l.b16 %v546
        %v586 = vunpack.c.l.b16 %v547
        %v587 = vunpack.c.l.b16 %v548
        %v588 = vunpack.c.l.b16 %v549
        %v589 = vunpack.c.l.b16 %v550
        %v590 = vunpack.c.l.b16 %v551
        %v591 = vunpack.c.l.b16 %v552
        %v592 = vunpack.c.l.b16 %v553
        %v593 = vunpack.c.l.b16 %v554
        %v594 = vunpack.c.l.b16 %v555
        %v595 = vunpack.c.l.b16 %v556
        %v596 = vunpack.c.l.b16 %v557
        %v597 = vunpack.c.l.b16 %v558
        %v598 = vunpack.c.l.b16 %v559
        %v599 = vpack.c.b16 %v584, %v583
        %v600 = vpack.c.b16 %v586, %v585
        %v601 = vpack.c.b16 %v588, %v587
        %v602 = vpack.c.b16 %v590, %v589
        %v603 = vpack.c.b16 %v592, %v591
        %v604 = vpack.c.b16 %v594, %v593
        %v605 = vpack.c.b16 %v596, %v595
        %v606 = vpack.c.b16 %v598, %v597
        %615 = vmatprep.subr.bf16.mxu0 0
        %616 = vmatpush1.bf16.msra.mxu0 %v599
        %617 = vmatprep.subr.bf16.mxu0 0
        %618 = vmatpush1.bf16.msra.mxu0 %v600
        %619 = vmatprep.subr.bf16.mxu0 0
        %620 = vmatpush1.bf16.msra.mxu0 %v601
        %621 = vmatprep.subr.bf16.mxu0 0
        %622 = vmatpush1.bf16.msra.mxu0 %v602
        %623 = vmatprep.subr.bf16.mxu0 0
        %624 = vmatpush1.bf16.msra.mxu0 %v603
        %625 = vmatprep.subr.bf16.mxu0 0
        %626 = vmatpush1.bf16.msra.mxu0 %v604
        %627 = vmatprep.subr.bf16.mxu0 0
        %628 = vmatpush1.bf16.msra.mxu0 %v605
        %629 = vmatprep.subr.bf16.mxu0 0
        %630 = vmatpush1.bf16.msra.mxu0 %v606
        %631 = vmatprep.subr.bf16.mxu0 0
        %632 = vmatpush1.bf16.msra.mxu0 0
        %633 = vmatprep.subr.bf16.mxu0 0
        %634 = vmatpush1.bf16.msra.mxu0 0
        %635 = vmatprep.subr.bf16.mxu0 0
        %636 = vmatpush1.bf16.msra.mxu0 0
        %637 = vmatprep.subr.bf16.mxu0 0
        %638 = vmatpush1.bf16.msra.mxu0 0
        %639 = vmatprep.subr.bf16.mxu0 0
        %640 = vmatpush1.bf16.msra.mxu0 0
        %641 = vmatprep.subr.bf16.mxu0 0
        %642 = vmatpush1.bf16.msra.mxu0 0
        %643 = vmatprep.subr.bf16.mxu0 0
        %644 = vmatpush1.bf16.msra.mxu0 0
        %645 = vmatprep.subr.bf16.mxu0 0
        %646 = vmatpush1.bf16.msra.mxu0 0
        %647 = vmatprep.mubr.bf16.mxu0 0
        %648 = vmatmul.mubr.bf16.gmra.mrb[0].mxu0 %v536
        %v649 = vpop.f32.mrb[0].mxu0
        %v650 = vadd.f32 %v565, %v649
        %v651 = vpop.f32.mrb[0].mxu0
        %v652 = vpop.f32.mrb[0].mxu0
        %v653 = vadd.f32 %v565, %v652
        %v654 = vpop.f32.mrb[0].mxu0
        %655 = vmatprep.mubr.bf16.mxu0 0
        %656 = vmatmul.mubr.bf16.gmra.mrb[0].mxu0 %v537
        %v657 = vpop.f32.mrb[0].mxu0
        %v658 = vadd.f32 %v565, %v657
        %v659 = vpop.f32.mrb[0].mxu0
        %v660 = vpop.f32.mrb[0].mxu0
        %v661 = vadd.f32 %v565, %v660
        %v662 = vpop.f32.mrb[0].mxu0
        %663 = vmatprep.mubr.bf16.mxu0 0
        %664 = vmatmul.mubr.bf16.gmra.mrb[0].mxu0 %v538
        %v665 = vpop.f32.mrb[0].mxu0
        %v666 = vadd.f32 %v565, %v665
        %v667 = vpop.f32.mrb[0].mxu0
        %v668 = vpop.f32.mrb[0].mxu0
        %v669 = vadd.f32 %v565, %v668
        %v670 = vpop.f32.mrb[0].mxu0
        %671 = vmatprep.mubr.bf16.mxu0 0
        %672 = vmatmul.mubr.bf16.gmra.mrb[0].mxu0 %v539
        %v673 = vpop.f32.mrb[0].mxu0
        %v674 = vadd.f32 %v565, %v673
        %v675 = vpop.f32.mrb[0].mxu0
        %v676 = vpop.f32.mrb[0].mxu0
        %v677 = vadd.f32 %v565, %v676
        %v678 = vpop.f32.mrb[0].mxu0
        %679 = vmatprep.mubr.bf16.mxu0 0
        %680 = vmatmul.mubr.bf16.gmra.mrb[0].mxu0 %v540
        %v681 = vpop.f32.mrb[0].mxu0
        %v682 = vadd.f32 %v565, %v681
        %v683 = vpop.f32.mrb[0].mxu0
        %v684 = vpop.f32.mrb[0].mxu0
        %v685 = vadd.f32 %v565, %v684
        %v686 = vpop.f32.mrb[0].mxu0
        %687 = vmatprep.mubr.bf16.mxu0 0
        %688 = vmatmul.mubr.bf16.gmra.mrb[0].mxu0 %v541
        %v689 = vpop.f32.mrb[0].mxu0
        %v690 = vadd.f32 %v565, %v689
        %v691 = vpop.f32.mrb[0].mxu0
        %v692 = vpop.f32.mrb[0].mxu0
        %v693 = vadd.f32 %v565, %v692
        %v694 = vpop.f32.mrb[0].mxu0
        %695 = vmatprep.mubr.bf16.mxu0 0
        %696 = vmatmul.mubr.bf16.gmra.mrb[0].mxu0 %v542
        %v697 = vpop.f32.mrb[0].mxu0
        %v698 = vadd.f32 %v565, %v697
        %v699 = vpop.f32.mrb[0].mxu0
        %v700 = vpop.f32.mrb[0].mxu0
        %v701 = vadd.f32 %v565, %v700
        %v702 = vpop.f32.mrb[0].mxu0
        %703 = vmatprep.mubr.bf16.mxu0 0
        %704 = vmatmul.mubr.bf16.gmra.mrb[0].mxu0 %v543
        %v705 = vpop.f32.mrb[0].mxu0
        %v706 = vadd.f32 %v565, %v705
        %v707 = vpop.f32.mrb[0].mxu0
        %v708 = vpop.f32.mrb[0].mxu0
        %v709 = vadd.f32 %v565, %v708
        %v710 = vpop.f32.mrb[0].mxu0
        %711 = vdwg.mxu0
        %v712 = vmax.f32 %v650, 0.0
        %v713 = vmax.f32 %v653, 0.0
        %v714 = vmax.f32 %v658, 0.0
        %v715 = vmax.f32 %v661, 0.0
        %v716 = vmax.f32 %v666, 0.0
        %v717 = vmax.f32 %v669, 0.0
        %v718 = vmax.f32 %v674, 0.0
        %v719 = vmax.f32 %v677, 0.0
        %v720 = vmax.f32 %v682, 0.0
        %v721 = vmax.f32 %v685, 0.0
        %v722 = vmax.f32 %v690, 0.0
        %v723 = vmax.f32 %v693, 0.0
        %v724 = vmax.f32 %v698, 0.0
        %v725 = vmax.f32 %v701, 0.0
        %v726 = vmax.f32 %v706, 0.0
        %v727 = vmax.f32 %v709, 0.0
        %v728 = vpack.c.bf16 %v713, %v712
        %v729 = vpack.c.bf16 %v715, %v714
        %v730 = vpack.c.bf16 %v717, %v716
        %v731 = vpack.c.bf16 %v719, %v718
        %v732 = vpack.c.bf16 %v721, %v720
        %v733 = vpack.c.bf16 %v723, %v722
        %v734 = vpack.c.bf16 %v725, %v724
        %v735 = vpack.c.bf16 %v727, %v726
        %v736 = vld [vmem:[#allocation10] sm:$0xf]
        %v737 = vld [vmem:[#allocation10 + $0x4] sm:$0xf]
        %v738 = vld [vmem:[#allocation10 + $0x8] sm:$0xf]
        %v739 = vld [vmem:[#allocation10 + $0xc] sm:$0xf]
        %v740 = vld [vmem:[#allocation10 + $0x10] sm:$0xf]
        %v741 = vld [vmem:[#allocation10 + $0x14] sm:$0xf]
        %v742 = vld [vmem:[#allocation10 + $0x18] sm:$0xf]
        %v743 = vld [vmem:[#allocation10 + $0x1c] sm:$0xf]
        %v744 = vld [vmem:[#allocation10 + $0x20] sm:$0xf]
        %v745 = vld [vmem:[#allocation10 + $0x24] sm:$0xf]
        %v746 = vld [vmem:[#allocation10 + $0x28] sm:$0xf]
        %v747 = vld [vmem:[#allocation10 + $0x2c] sm:$0xf]
        %v748 = vld [vmem:[#allocation10 + $0x30] sm:$0xf]
        %v749 = vld [vmem:[#allocation10 + $0x34] sm:$0xf]
        %v750 = vld [vmem:[#allocation10 + $0x38] sm:$0xf]
        %v751 = vld [vmem:[#allocation10 + $0x3c] sm:$0xf]
        %v752 = vld [vmem:[%s6] sm:$0x1]
        %v754 = vlaneseq
        %v755 = vshrl.u32 %v754, 7
        %v756 = vsub.s32 0, %v755
        %v757 = vrot.slane %v752, %v756
        %v775 = vunpack.c.l.b16 %v736
        %v776 = vunpack.c.l.b16 %v737
        %v777 = vunpack.c.l.b16 %v738
        %v778 = vunpack.c.l.b16 %v739
        %v779 = vunpack.c.l.b16 %v740
        %v780 = vunpack.c.l.b16 %v741
        %v781 = vunpack.c.l.b16 %v742
        %v782 = vunpack.c.l.b16 %v743
        %v783 = vunpack.c.l.b16 %v744
        %v784 = vunpack.c.l.b16 %v745
        %v785 = vunpack.c.l.b16 %v746
        %v786 = vunpack.c.l.b16 %v747
        %v787 = vunpack.c.l.b16 %v748
        %v788 = vunpack.c.l.b16 %v749
        %v789 = vunpack.c.l.b16 %v750
        %v790 = vunpack.c.l.b16 %v751
        %v791 = vpack.c.b16 %v776, %v775
        %v792 = vpack.c.b16 %v778, %v777
        %v793 = vpack.c.b16 %v780, %v779
        %v794 = vpack.c.b16 %v782, %v781
        %v795 = vpack.c.b16 %v784, %v783
        %v796 = vpack.c.b16 %v786, %v785
        %v797 = vpack.c.b16 %v788, %v787
        %v798 = vpack.c.b16 %v790, %v789
        %807 = vmatprep.subr.bf16.mxu0 0
        %808 = vmatpush1.bf16.msra.mxu0 %v791
        %809 = vmatprep.subr.bf16.mxu0 0
        %810 = vmatpush1.bf16.msra.mxu0 %v792
        %811 = vmatprep.subr.bf16.mxu0 0
        %812 = vmatpush1.bf16.msra.mxu0 %v793
        %813 = vmatprep.subr.bf16.mxu0 0
        %814 = vmatpush1.bf16.msra.mxu0 %v794
        %815 = vmatprep.subr.bf16.mxu0 0
        %816 = vmatpush1.bf16.msra.mxu0 %v795
        %817 = vmatprep.subr.bf16.mxu0 0
        %818 = vmatpush1.bf16.msra.mxu0 %v796
        %819 = vmatprep.subr.bf16.mxu0 0
        %820 = vmatpush1.bf16.msra.mxu0 %v797
        %821 = vmatprep.subr.bf16.mxu0 0
        %822 = vmatpush1.bf16.msra.mxu0 %v798
        %823 = vmatprep.subr.bf16.mxu0 0
        %824 = vmatpush1.bf16.msra.mxu0 0
        %825 = vmatprep.subr.bf16.mxu0 0
        %826 = vmatpush1.bf16.msra.mxu0 0
        %827 = vmatprep.subr.bf16.mxu0 0
        %828 = vmatpush1.bf16.msra.mxu0 0
        %829 = vmatprep.subr.bf16.mxu0 0
        %830 = vmatpush1.bf16.msra.mxu0 0
        %831 = vmatprep.subr.bf16.mxu0 0
        %832 = vmatpush1.bf16.msra.mxu0 0
        %833 = vmatprep.subr.bf16.mxu0 0
        %834 = vmatpush1.bf16.msra.mxu0 0
        %835 = vmatprep.subr.bf16.mxu0 0
        %836 = vmatpush1.bf16.msra.mxu0 0
        %837 = vmatprep.subr.bf16.mxu0 0
        %838 = vmatpush1.bf16.msra.mxu0 0
        %839 = vmatprep.mubr.bf16.mxu0 0
        %840 = vmatmul.mubr.bf16.gmra.mrb[0].mxu0 %v728
        %v841 = vpop.f32.mrb[0].mxu0
        %v842 = vadd.f32 %v757, %v841
        %v843 = vpop.f32.mrb[0].mxu0
        %v844 = vpop.f32.mrb[0].mxu0
        %v845 = vadd.f32 %v757, %v844
        %v846 = vpop.f32.mrb[0].mxu0
        %847 = vmatprep.mubr.bf16.mxu0 0
        %848 = vmatmul.mubr.bf16.gmra.mrb[0].mxu0 %v729
        %v849 = vpop.f32.mrb[0].mxu0
        %v850 = vadd.f32 %v757, %v849
        %v851 = vpop.f32.mrb[0].mxu0
        %v852 = vpop.f32.mrb[0].mxu0
        %v853 = vadd.f32 %v757, %v852
        %v854 = vpop.f32.mrb[0].mxu0
        %855 = vmatprep.mubr.bf16.mxu0 0
        %856 = vmatmul.mubr.bf16.gmra.mrb[0].mxu0 %v730
        %v857 = vpop.f32.mrb[0].mxu0
        %v858 = vadd.f32 %v757, %v857
        %v859 = vpop.f32.mrb[0].mxu0
        %v860 = vpop.f32.mrb[0].mxu0
        %v861 = vadd.f32 %v757, %v860
        %v862 = vpop.f32.mrb[0].mxu0
        %863 = vmatprep.mubr.bf16.mxu0 0
        %864 = vmatmul.mubr.bf16.gmra.mrb[0].mxu0 %v731
        %v865 = vpop.f32.mrb[0].mxu0
        %v866 = vadd.f32 %v757, %v865
        %v867 = vpop.f32.mrb[0].mxu0
        %v868 = vpop.f32.mrb[0].mxu0
        %v869 = vadd.f32 %v757, %v868
        %v870 = vpop.f32.mrb[0].mxu0
        %871 = vmatprep.mubr.bf16.mxu0 0
        %872 = vmatmul.mubr.bf16.gmra.mrb[0].mxu0 %v732
        %v873 = vpop.f32.mrb[0].mxu0
        %v874 = vadd.f32 %v757, %v873
        %v875 = vpop.f32.mrb[0].mxu0
        %v876 = vpop.f32.mrb[0].mxu0
        %v877 = vadd.f32 %v757, %v876
        %v878 = vpop.f32.mrb[0].mxu0
        %879 = vmatprep.mubr.bf16.mxu0 0
        %880 = vmatmul.mubr.bf16.gmra.mrb[0].mxu0 %v733
        %v881 = vpop.f32.mrb[0].mxu0
        %v882 = vadd.f32 %v757, %v881
        %v883 = vpop.f32.mrb[0].mxu0
        %v884 = vpop.f32.mrb[0].mxu0
        %v885 = vadd.f32 %v757, %v884
        %v886 = vpop.f32.mrb[0].mxu0
        %887 = vmatprep.mubr.bf16.mxu0 0
        %888 = vmatmul.mubr.bf16.gmra.mrb[0].mxu0 %v734
        %v889 = vpop.f32.mrb[0].mxu0
        %v890 = vadd.f32 %v757, %v889
        %v891 = vpop.f32.mrb[0].mxu0
        %v892 = vpop.f32.mrb[0].mxu0
        %v893 = vadd.f32 %v757, %v892
        %v894 = vpop.f32.mrb[0].mxu0
        %895 = vmatprep.mubr.bf16.mxu0 0
        %896 = vmatmul.mubr.bf16.gmra.mrb[0].mxu0 %v735
        %v897 = vpop.f32.mrb[0].mxu0
        %v898 = vadd.f32 %v757, %v897
        %v899 = vpop.f32.mrb[0].mxu0
        %v900 = vpop.f32.mrb[0].mxu0
        %v901 = vadd.f32 %v757, %v900
        %v902 = vpop.f32.mrb[0].mxu0
        %903 = vdwg.mxu0
        %v904 = vpack.c.bf16 %v845, %v842
        %v905 = vpack.c.bf16 %v853, %v850
        %v906 = vpack.c.bf16 %v861, %v858
        %v907 = vpack.c.bf16 %v869, %v866
        %v908 = vpack.c.bf16 %v877, %v874
        %v909 = vpack.c.bf16 %v885, %v882
        %v910 = vpack.c.bf16 %v893, %v890
        %v911 = vpack.c.bf16 %v901, %v898
        %v920 = vunpack.c.l.b16 %v904
        %v921 = vunpack.c.h.b16 %v904
        %v922 = vunpack.c.l.b16 %v905
        %v923 = vunpack.c.h.b16 %v905
        %v924 = vunpack.c.l.b16 %v906
        %v925 = vunpack.c.h.b16 %v906
        %v926 = vunpack.c.l.b16 %v907
        %v927 = vunpack.c.h.b16 %v907
        %v928 = vunpack.c.l.b16 %v908
        %v929 = vunpack.c.h.b16 %v908
        %v930 = vunpack.c.l.b16 %v909
        %v931 = vunpack.c.h.b16 %v909
        %v932 = vunpack.c.l.b16 %v910
        %v933 = vunpack.c.h.b16 %v910
        %v934 = vunpack.c.l.b16 %v911
        %v935 = vunpack.c.h.b16 %v911
        %v936 = vpack.c.b16 %v920, %v920
        %v937 = vpack.c.b16 %v921, %v921
        %v938 = vpack.c.b16 %v922, %v922
        %v939 = vpack.c.b16 %v923, %v923
        %v940 = vpack.c.b16 %v924, %v924
        %v941 = vpack.c.b16 %v925, %v925
        %v942 = vpack.c.b16 %v926, %v926
        %v943 = vpack.c.b16 %v927, %v927
        %v944 = vpack.c.b16 %v928, %v928
        %v945 = vpack.c.b16 %v929, %v929
        %v946 = vpack.c.b16 %v930, %v930
        %v947 = vpack.c.b16 %v931, %v931
        %v948 = vpack.c.b16 %v932, %v932
        %v949 = vpack.c.b16 %v933, %v933
        %v950 = vpack.c.b16 %v934, %v934
        %v951 = vpack.c.b16 %v935, %v935
        %968 = vst [vmem:[%s402] sm:$0xf] %v936
        %969 = vst [vmem:[%s402 + $0x4] sm:$0xf] %v937
        %970 = vst [vmem:[%s402 + $0x8] sm:$0xf] %v938
        %971 = vst [vmem:[%s402 + $0xc] sm:$0xf] %v939
        %972 = vst [vmem:[%s402 + $0x10] sm:$0xf] %v940
        %973 = vst [vmem:[%s402 + $0x14] sm:$0xf] %v941
        %974 = vst [vmem:[%s402 + $0x18] sm:$0xf] %v942
        %975 = vst [vmem:[%s402 + $0x1c] sm:$0xf] %v943
        %976 = vst [vmem:[%s402 + $0x20] sm:$0xf] %v944
        %977 = vst [vmem:[%s402 + $0x24] sm:$0xf] %v945
        %978 = vst [vmem:[%s402 + $0x28] sm:$0xf] %v946
        %979 = vst [vmem:[%s402 + $0x2c] sm:$0xf] %v947
        %980 = vst [vmem:[%s402 + $0x30] sm:$0xf] %v948
        %981 = vst [vmem:[%s402 + $0x34] sm:$0xf] %v949
        %982 = vst [vmem:[%s402 + $0x38] sm:$0xf] %v950
        %983 = vst [vmem:[%s402 + $0x3c] sm:$0xf] %v951
        %s984 = sand.u32 %s198, 1
        %s985 = scalar_lea.sflag [#allocation4], %s984
        %s986 = sand.u32 %s198, 1
        %s987 = smul.addr %s986, 64
        %s988 = scalar_lea.vmem [#allocation11], %s987
        // Predicated region
        $region69: #{tpu_custom_call.1} parent=47 // pred_check
          %p989 = pneg %p208
        $region70: #{tpu_custom_call.1} parent=47 // pred_check_branch
          %991 = sbr.rel (%p989) target = $region72
        $region71: #{tpu_custom_call.1} parent=47 // pred_region
          %s992 = smul.u32 16, %s28
          %s994 = ssub.s32 1024, 1024
          %995 = vsyncadd %s985, %s994
          %s996 = smul.addr %s992, 64
          %s997 = scalar_lea.hbm %s7, %s996
          %s998 = sshll.u32 %s988, 4
          %s999 = int_to_ptr.vmem [resolvable:$true] %s998
          %1004 = dma.vmem_to_hbm [thread:$0]  %s999, 1024, %s997, %s985, 64, 64, 4
        $region72: #{tpu_custom_call.1} parent=47 // pred_fallthru
          _
      $region48: #{tpu_custom_call.1} parent=5 // pred_fallthru
        _
      %p1005 = scmp.le.s32.totalorder 2, %s23
      // Predicated region
      $region73: #{tpu_custom_call.1} parent=5 // pred_check
        %p1006 = pneg %p1005
      $region74: #{tpu_custom_call.1} parent=5 // pred_check_branch
        %1008 = sbr.rel (%p1006) target = $region76
      $region75: #{tpu_custom_call.1} parent=5 // pred_region
        %s1009 = ssub.s32 %s23, 2
        // Predicated region
        $region77: #{tpu_custom_call.1} parent=75 // pred_check
          %p1010 = pneg %p214
        $region78: #{tpu_custom_call.1} parent=75 // pred_check_branch
          %1012 = sbr.rel (%p1010) target = $region80
        $region79: #{tpu_custom_call.1} parent=75 // pred_region
          %s1013 = sand.u32 %s199, 1
          %s1014 = scalar_lea.sflag [#allocation4], %s1013
          %s1015 = sand.u32 %s199, 1
          %s1016 = smul.addr %s1015, 64
          %s1017 = scalar_lea.vmem [#allocation11], %s1016
          %1018 = dma.done %s1014, 1024
        $region80: #{tpu_custom_call.1} parent=75 // pred_fallthru
          _
      $region76: #{tpu_custom_call.1} parent=5 // pred_fallthru
        _
    $region6: #{tpu_custom_call.1} parent=1 // loop_footer
      %s27 = sadd.s32 1, %s23
    $region7: #{tpu_custom_call.1} parent=1 // loop_footer_branch
      %22 = sbr.rel target = $region3
    $region8: #{tpu_custom_call.1} parent=1 // loop_exit
      _
    %1019 = vsyncpa [#allocation3], 1
    %s1020 = scalar_lea.sflag [#allocation3], 1
    %1021 = vsyncpa %s1020, 1
    %1022 = vsyncpa [#allocation6], 1
    %s1023 = scalar_lea.sflag [#allocation6], 1
    %1024 = vsyncpa %s1023, 1
    %1025 = vsyncpa [#allocation9], 1
    %1026 = vsyncpa [#allocation4], 1
    %s1027 = scalar_lea.sflag [#allocation4], 1
    %1028 = vsyncpa %s1027, 1

</llo_original>
